<compile_context>
chip_gen: v7x
topology: tpu7x:2x2x1
jax: 0.10.0
libtpu: 0.0.40
codegen_flags: <defaults>
</compile_context>

<pallas_src>
import functools

import jax
import jax.numpy as jnp
from jax import lax
from jax.experimental import pallas as pl
from jax.experimental.pallas import tpu as pltpu


def _round_up(x, m):
    return ((x + m - 1) // m) * m


def _vmem_limit_bytes():
    """Scoped-VMEM limit derived from the chip (v5e/v6e: 64 MiB, v7x: 32 MiB)."""
    cap = 64 * 1024 * 1024
    try:
        info = pltpu.get_tpu_info()
        cap = int(getattr(info, "vmem_capacity_bytes", cap))
    except Exception:
        pass
    return int(min(max(cap // 2, 32 * 1024 * 1024), 64 * 1024 * 1024))


def _pick_tile(total, cap, multiple=8):
    """Largest divisor of `total` <= cap that is a multiple of `multiple` or equals
    `total` (second-to-last block dims must be 8-aligned or full extent).  Falls
    back to the smallest valid divisor.  O(sqrt(total))."""
    best = None
    smallest_valid = total
    i = 1
    while i * i <= total:
        if total % i == 0:
            for d in (i, total // i):
                if (d % multiple == 0) or (d == total):
                    smallest_valid = min(smallest_valid, d)
                    if d <= cap and (best is None or d > best):
                        best = d
        i += 1
    return best if best is not None else smallest_valid


# ----------------------------------------------------------------------------
# Kernel 1: the two softmax losses (cal_loss_L hot path), batch-tiled,
#           per-tile partial losses on a parallel grid axis.
# ----------------------------------------------------------------------------
def _loss_kernel(u_ref, p_ref, nT_ref, w_ref, l1_ref, l2_ref, *,
                 neg_scale, margin1, margin2):
    u = u_ref[...].astype(jnp.float32)        # [tB, D]
    p = p_ref[...].astype(jnp.float32)        # [tB, D]
    n = nT_ref[...].astype(jnp.float32)       # [tB, D, N]  (D on sublanes, N on lanes)
    w = w_ref[...].astype(jnp.float32)        # [tB, 2]

    eps = 1e-12  # F.normalize default eps

    def inv_norm(ss):
        # 1 / max(||x||, eps) == rsqrt(max(||x||^2, eps^2))   (EUP rsqrt)
        return lax.rsqrt(jnp.maximum(ss, eps * eps))

    u_n = u * inv_norm(jnp.sum(u * u, axis=-1, keepdims=True))      # [tB, D]

    # pos path (D on lanes, tiny).
    pos_scores = jnp.sum(u_n * p, axis=-1, keepdims=True)           # [tB, 1]
    norm_pos_scores = pos_scores * inv_norm(
        jnp.sum(p * p, axis=-1, keepdims=True))                     # [tB, 1]

    # neg path: contraction over D is a sublane reduce, results are lane-dense.
    neg_scores = jnp.sum(u_n[:, :, None] * n, axis=1)               # [tB, N]
    norm_neg_scores = neg_scores * inv_norm(jnp.sum(n * n, axis=1)) # [tB, N]

    w1 = w[:, 0:1]   # pos_weight + user_pos_weight         (inner-product loss)
    w2 = w[:, 1:2]   # norm_pos_weight + norm_user_weight   (cosine loss)

    def partial_loss(pos, neg, wsum, margin):
        # -sum_b log( exp(lp) / (neg_scale*sum(exp(ln)) + exp(lp) + 1e-7) )
        # computed in a max-shifted, log-domain form (matches reference to fp err).
        inv_m = 1.0 / margin
        pos_logit = (pos + wsum) * inv_m                             # [tB, 1]
        neg_logit = neg * inv_m                                      # [tB, N]
        m = jnp.maximum(jnp.max(neg_logit, axis=-1, keepdims=True), pos_logit)
        exp_pos = jnp.exp(pos_logit - m)                             # [tB, 1]
        exp_neg_sum = jnp.sum(jnp.exp(neg_logit - m), axis=-1, keepdims=True)
        denom = neg_scale * exp_neg_sum + exp_pos + 1e-07 * jnp.exp(-m)
        ratio = pos_logit - (m + jnp.log(denom))                     # log(num/denom)
        return -jnp.sum(ratio, axis=(0, 1), keepdims=True)           # (1, 1) partial

    l1_ref[...] = partial_loss(pos_scores, neg_scores, w1, margin1)[None]
    l2_ref[...] = partial_loss(norm_pos_scores, norm_neg_scores, w2, margin2)[None]


def pallas_softmax_losses(u_emb, pos_emb, neg_emb_t, weights, *,
                          negative_num, margin1, margin2, vmem_limit):
    B, D = u_emb.shape
    N = neg_emb_t.shape[2]

    # Padding-aware per-batch-row footprint (f32, lane dim -> 128, sublane -> 8).
    neg_row = 4 * _round_up(D, 8) * _round_up(N, 128)     # [tB, D, N] block
    vec_row = 4 * _round_up(D, 128)                       # [tB, D] blocks (u, p)
    w_row = 4 * 128                                       # [tB, 2] block
    # double-buffered inputs + ~2 neg-block-sized f32 temporaries in the body
    bytes_per_row = 2 * (neg_row + 2 * vec_row + w_row) + 2 * neg_row
    cap = max(1, (vmem_limit // 2) // bytes_per_row)
    tB = _pick_tile(B, cap)
    num_tiles = B // tB

    kern = functools.partial(
        _loss_kernel,
        neg_scale=float(negative_num) / float(N),
        margin1=float(margin1), margin2=float(margin2))

    l1p, l2p = pl.pallas_call(
        kern,
        out_shape=(jax.ShapeDtypeStruct((num_tiles, 1, 1), jnp.float32),
                   jax.ShapeDtypeStruct((num_tiles, 1, 1), jnp.float32)),
        grid=(num_tiles,),
        in_specs=[
            pl.BlockSpec((tB, D), lambda i: (i, 0)),
            pl.BlockSpec((tB, D), lambda i: (i, 0)),
            pl.BlockSpec((tB, D, N), lambda i: (i, 0, 0)),
            pl.BlockSpec((tB, 2), lambda i: (i, 0)),
        ],
        out_specs=(pl.BlockSpec((1, 1, 1), lambda i: (i, 0, 0)),
                   pl.BlockSpec((1, 1, 1), lambda i: (i, 0, 0))),
        compiler_params=pltpu.CompilerParams(
            dimension_semantics=("parallel",),
            vmem_limit_bytes=vmem_limit),
    )(u_emb, pos_emb, neg_emb_t, weights)

    inv_b = 1.0 / float(B)
    return jnp.sum(l1p) * inv_b, jnp.sum(l2p) * inv_b


# ----------------------------------------------------------------------------
# Kernel 2: sum of squares of a parameter table (norm_loss hot path).
#   Table is flattened to a lane-dense [rows, 128] slab; per-tile lane-dense
#   column partials on a parallel grid axis; tiny final reduce outside.
# ----------------------------------------------------------------------------
def _sumsq_partial_kernel(x_ref, o_ref):
    x = x_ref[...].astype(jnp.float32)                        # [tile_rows, 128]
    o_ref[...] = jnp.sum(x * x, axis=0, keepdims=True)[None]  # [1, 1, 128]


def pallas_sumsq(x, *, vmem_limit):
    lanes = 128
    total = int(x.size)
    flat = x.reshape(-1)
    main = (total // lanes) * lanes

    tail_sum = 0.0
    if main < total:
        t = flat[main:].astype(jnp.float32)
        tail_sum = jnp.sum(t * t)
    if main == 0:
        return tail_sum

    rows = main // lanes
    x2 = flat[:main].reshape(rows, lanes)     # free, contiguous reshape

    bytes_per_row = 4 * lanes * 3             # double-buffered input + f32 temp
    cap = max(1, (vmem_limit // 2) // bytes_per_row)
    tile_rows = _pick_tile(rows, cap)
    num_tiles = rows // tile_rows

    partials = pl.pallas_call(
        _sumsq_partial_kernel,
        out_shape=jax.ShapeDtypeStruct((num_tiles, 1, lanes), jnp.float32),
        grid=(num_tiles,),
        in_specs=[pl.BlockSpec((tile_rows, lanes), lambda i: (i, 0))],
        out_specs=pl.BlockSpec((1, 1, lanes), lambda i: (i, 0, 0)),
        compiler_params=pltpu.CompilerParams(
            dimension_semantics=("parallel",),
            vmem_limit_bytes=vmem_limit),
    )(x2)
    return jnp.sum(partials) + tail_sum


# ----------------------------------------------------------------------------
# Model wrapper (glue: embedding gather, popularity weights, final scalar math)
# ----------------------------------------------------------------------------
class PallasModel:
    def __init__(self, key, *, user_num, item_num, embedding_dim, negative_num,
                 gamma, weight, margin1, margin2, initial_weight,
                 user_degree, item_degree, user_max_degree, item_max_degree):
        k1, k2 = jax.random.split(key)
        self.user_embeds = (initial_weight *
                            jax.random.normal(k1, (user_num, embedding_dim),
                                              jnp.float32))
        self.item_embeds = (initial_weight *
                            jax.random.normal(k2, (item_num, embedding_dim),
                                              jnp.float32))
        self.user_degree = user_degree.astype(jnp.float32)
        self.item_degree = item_degree.astype(jnp.float32)
        self.user_max_degree = float(user_max_degree)
        self.item_max_degree = float(item_max_degree)
        self.negative_num = negative_num
        self.gamma = float(gamma)
        self.weight = float(weight)
        self.margin1 = float(margin1)
        self.margin2 = float(margin2)
        self.vmem_limit = _vmem_limit_bytes()

        # Hoisted normalizers (reference recomputes min() every forward).
        self._user_norm_denom = -jnp.log(
            jnp.min(self.user_degree) * self.user_max_degree + 1e-07)
        self._item_norm_denom = -jnp.log(
            jnp.min(self.item_degree) * self.item_max_degree + 1e-07)

    def _pop_weights(self, users, pos_items):
        user_pos_w = jnp.log(self.user_degree[users] * self.user_max_degree)
        pos_w = jnp.log(self.item_degree[pos_items] * self.item_max_degree)
        # col 0: pos_weight + user_pos_weight          (inner-product loss)
        # col 1: norm_pos_weight + norm_user_weight    (cosine loss)
        w1 = user_pos_w + pos_w
        w2 = user_pos_w / self._user_norm_denom + pos_w / self._item_norm_denom
        return jnp.stack([w1, w2], axis=-1).astype(jnp.float32)

    def norm_loss(self):
        return 0.5 * (pallas_sumsq(self.user_embeds, vmem_limit=self.vmem_limit) +
                      pallas_sumsq(self.item_embeds, vmem_limit=self.vmem_limit))

    def forward(self, users, pos_items, neg_items):
        u_emb = self.user_embeds[users]                       # [B, D]
        pos_emb = self.item_embeds[pos_items]                 # [B, D]
        # [B, N, D] -> [B, D, N]: contraction dim on sublanes, N lane-dense.
        neg_emb_t = jnp.swapaxes(self.item_embeds[neg_items], 1, 2)
        weights = self._pop_weights(users, pos_items)

        l1, l2 = pallas_softmax_losses(
            u_emb, pos_emb, neg_emb_t, weights,
            negative_num=self.negative_num,
            margin1=self.margin1, margin2=self.margin2,
            vmem_limit=self.vmem_limit)

        loss1w = self.weight * l1
        reg = self.gamma * self.norm_loss()
        total = loss1w + l2 + reg
        return total, loss1w, l2, reg


# ----------------------------------------------------------------------------
if __name__ == "__main__":
    key = jax.random.PRNGKey(0)
    k_model, k_ud, k_id, k_u, k_p, k_n = jax.random.split(key, 6)

    USER_NUM, ITEM_NUM = 64, 96
    EMB_DIM = 32
    BATCH, NEG = 8, 8
    USER_MAX_DEG, ITEM_MAX_DEG = 50, 80

    # Degrees such that degree * max_degree >= 2 so the reference's
    # -log(min_degree*max_degree + 1e-7) normalizer stays well away from zero.
    user_degree = (jax.random.randint(k_ud, (USER_NUM,), 2, USER_MAX_DEG + 1)
                   .astype(jnp.float32) / USER_MAX_DEG)
    item_degree = (jax.random.randint(k_id, (ITEM_NUM,), 2, ITEM_MAX_DEG + 1)
                   .astype(jnp.float32) / ITEM_MAX_DEG)

    model = PallasModel(
        k_model,
        user_num=USER_NUM, item_num=ITEM_NUM, embedding_dim=EMB_DIM,
        negative_num=NEG, gamma=1e-4, weight=0.5,
        margin1=0.5, margin2=0.2, initial_weight=0.1,
        user_degree=user_degree, item_degree=item_degree,
        user_max_degree=USER_MAX_DEG, item_max_degree=ITEM_MAX_DEG)

    users = jax.random.randint(k_u, (BATCH,), 0, USER_NUM)
    pos_items = jax.random.randint(k_p, (BATCH,), 0, ITEM_NUM)
    neg_items = jax.random.randint(k_n, (BATCH, NEG), 0, ITEM_NUM)

    total, loss1w, loss2, reg = model.forward(users, pos_items, neg_items)
    jax.block_until_ready((total, loss1w, loss2, reg))
    print("KERNEL_OK")
</pallas_src>

<mosaic_0001>
module attributes {stable_mosaic.version = 11 : i64} {
  func.func @_loss_kernel(%arg0: i32, %arg1: memref<8x32xf32, #tpu.memory_space<vmem>>, %arg2: memref<8x32xf32, #tpu.memory_space<vmem>>, %arg3: memref<8x32x8xf32, #tpu.memory_space<vmem>>, %arg4: memref<8x2xf32, #tpu.memory_space<vmem>>, %arg5: memref<1x1x1xf32, #tpu.memory_space<vmem>>, %arg6: memref<1x1x1xf32, #tpu.memory_space<vmem>>) attributes {dimension_semantics = [#tpu.dimension_semantics<parallel>], iteration_bounds = array<i64: 1>, scalar_prefetch = 0 : i64, scratch_operands = 0 : i64, tpu.core_type = #tpu.core_type<tc>, window_params = [{transform_indices = @transform_0, window_bounds = array<i64: 8, 32>}, {transform_indices = @transform_1, window_bounds = array<i64: 8, 32>}, {transform_indices = @transform_2, window_bounds = array<i64: 8, 32, 8>}, {transform_indices = @transform_3, window_bounds = array<i64: 8, 2>}, {transform_indices = @transform_4, window_bounds = array<i64: 1, 1, 1>}, {transform_indices = @transform_5, window_bounds = array<i64: 1, 1, 1>}]} {
    %c0 = arith.constant 0 : index
    %c0_0 = arith.constant 0 : index
    %0 = vector.load %arg1[%c0, %c0_0] : memref<8x32xf32, #tpu.memory_space<vmem>>, vector<8x32xf32>
    %c0_1 = arith.constant 0 : index
    %c0_2 = arith.constant 0 : index
    %1 = vector.load %arg2[%c0_1, %c0_2] : memref<8x32xf32, #tpu.memory_space<vmem>>, vector<8x32xf32>
    %c0_3 = arith.constant 0 : index
    %c0_4 = arith.constant 0 : index
    %c0_5 = arith.constant 0 : index
    %2 = vector.load %arg3[%c0_3, %c0_4, %c0_5] : memref<8x32x8xf32, #tpu.memory_space<vmem>>, vector<8x32x8xf32>
    %c0_6 = arith.constant 0 : index
    %c0_7 = arith.constant 0 : index
    %3 = vector.load %arg4[%c0_6, %c0_7] : memref<8x2xf32, #tpu.memory_space<vmem>>, vector<8x2xf32>
    %4 = arith.mulf %0, %0 : vector<8x32xf32>
    %cst = arith.constant dense<0.000000e+00> : vector<8xf32>
    %5 = vector.multi_reduction <add>, %4, %cst [1] : vector<8x32xf32> to vector<8xf32>
    %6 = vector.shape_cast %5 : vector<8xf32> to vector<8x1xf32>
    %cst_8 = arith.constant 1.000000e-24 : f32
    %7 = vector.broadcast %cst_8 : f32 to vector<8x1xf32>
    %8 = arith.maximumf %6, %7 : vector<8x1xf32>
    %9 = math.rsqrt %8 : vector<8x1xf32>
    %10 = vector.broadcast %9 : vector<8x1xf32> to vector<8x32xf32>
    %11 = arith.mulf %0, %10 : vector<8x32xf32>
    %12 = arith.mulf %11, %1 : vector<8x32xf32>
    %cst_9 = arith.constant dense<0.000000e+00> : vector<8xf32>
    %13 = vector.multi_reduction <add>, %12, %cst_9 [1] : vector<8x32xf32> to vector<8xf32>
    %14 = vector.shape_cast %13 : vector<8xf32> to vector<8x1xf32>
    %15 = arith.mulf %1, %1 : vector<8x32xf32>
    %cst_10 = arith.constant dense<0.000000e+00> : vector<8xf32>
    %16 = vector.multi_reduction <add>, %15, %cst_10 [1] : vector<8x32xf32> to vector<8xf32>
    %17 = vector.shape_cast %16 : vector<8xf32> to vector<8x1xf32>
    %cst_11 = arith.constant 1.000000e-24 : f32
    %18 = vector.broadcast %cst_11 : f32 to vector<8x1xf32>
    %19 = arith.maximumf %17, %18 : vector<8x1xf32>
    %20 = math.rsqrt %19 : vector<8x1xf32>
    %21 = arith.mulf %14, %20 : vector<8x1xf32>
    %22 = vector.shape_cast %11 : vector<8x32xf32> to vector<8x32x1xf32>
    %23 = vector.broadcast %22 : vector<8x32x1xf32> to vector<8x32x8xf32>
    %24 = arith.mulf %23, %2 : vector<8x32x8xf32>
    %cst_12 = arith.constant dense<0.000000e+00> : vector<8x8xf32>
    %25 = vector.multi_reduction <add>, %24, %cst_12 [1] : vector<8x32x8xf32> to vector<8x8xf32>
    %26 = arith.mulf %2, %2 : vector<8x32x8xf32>
    %cst_13 = arith.constant dense<0.000000e+00> : vector<8x8xf32>
    %27 = vector.multi_reduction <add>, %26, %cst_13 [1] : vector<8x32x8xf32> to vector<8x8xf32>
    %cst_14 = arith.constant 1.000000e-24 : f32
    %28 = vector.broadcast %cst_14 : f32 to vector<8x8xf32>
    %29 = arith.maximumf %27, %28 : vector<8x8xf32>
    %30 = math.rsqrt %29 : vector<8x8xf32>
    %31 = arith.mulf %25, %30 : vector<8x8xf32>
    %32 = vector.extract_strided_slice %3 {offsets = [0, 0], sizes = [8, 1], strides = [1, 1]} : vector<8x2xf32> to vector<8x1xf32>
    %33 = vector.extract_strided_slice %3 {offsets = [0, 1], sizes = [8, 1], strides = [1, 1]} : vector<8x2xf32> to vector<8x1xf32>
    %34 = arith.addf %14, %32 : vector<8x1xf32>
    %cst_15 = arith.constant 2.000000e+00 : f32
    %35 = vector.broadcast %cst_15 : f32 to vector<8x1xf32>
    %36 = arith.mulf %34, %35 : vector<8x1xf32>
    %cst_16 = arith.constant 2.000000e+00 : f32
    %37 = vector.broadcast %cst_16 : f32 to vector<8x8xf32>
    %38 = arith.mulf %25, %37 : vector<8x8xf32>
    %cst_17 = arith.constant dense<0xFF800000> : vector<8xf32>
    %39 = vector.multi_reduction <maximumf>, %38, %cst_17 [1] : vector<8x8xf32> to vector<8xf32>
    %40 = vector.shape_cast %39 : vector<8xf32> to vector<8x1xf32>
    %41 = arith.maximumf %40, %36 : vector<8x1xf32>
    %42 = arith.subf %36, %41 : vector<8x1xf32>
    %43 = math.exp %42 : vector<8x1xf32>
    %44 = vector.broadcast %41 : vector<8x1xf32> to vector<8x8xf32>
    %45 = arith.subf %38, %44 : vector<8x8xf32>
    %46 = math.exp %45 : vector<8x8xf32>
    %cst_18 = arith.constant dense<0.000000e+00> : vector<8xf32>
    %47 = vector.multi_reduction <add>, %46, %cst_18 [1] : vector<8x8xf32> to vector<8xf32>
    %48 = vector.shape_cast %47 : vector<8xf32> to vector<8x1xf32>
    %cst_19 = arith.constant 1.000000e+00 : f32
    %49 = vector.broadcast %cst_19 : f32 to vector<8x1xf32>
    %50 = arith.mulf %49, %48 : vector<8x1xf32>
    %51 = arith.addf %50, %43 : vector<8x1xf32>
    %cst_20 = arith.constant 0.000000e+00 : f32
    %52 = vector.broadcast %cst_20 : f32 to vector<8x1xf32>
    %53 = arith.subf %52, %41 : vector<8x1xf32>
    %54 = math.exp %53 : vector<8x1xf32>
    %cst_21 = arith.constant 1.000000e-07 : f32
    %55 = vector.broadcast %cst_21 : f32 to vector<8x1xf32>
    %56 = arith.mulf %55, %54 : vector<8x1xf32>
    %57 = arith.addf %51, %56 : vector<8x1xf32>
    %58 = math.log %57 : vector<8x1xf32>
    %59 = arith.addf %41, %58 : vector<8x1xf32>
    %60 = arith.subf %36, %59 : vector<8x1xf32>
    %61 = vector.shape_cast %60 : vector<8x1xf32> to vector<1x8x1xf32>
    %cst_22 = arith.constant dense<0.000000e+00> : vector<1xf32>
    %62 = vector.multi_reduction <add>, %61, %cst_22 [1, 2] : vector<1x8x1xf32> to vector<1xf32>
    %63 = vector.shape_cast %62 : vector<1xf32> to vector<1x1x1xf32>
    %64 = vector.extract %63[0, 0, 0] : f32 from vector<1x1x1xf32>
    %65 = vector.broadcast %64 : f32 to vector<1x1xf32>
    %cst_23 = arith.constant 0.000000e+00 : f32
    %66 = vector.broadcast %cst_23 : f32 to vector<1x1xf32>
    %67 = arith.subf %66, %65 : vector<1x1xf32>
    %68 = vector.shape_cast %67 : vector<1x1xf32> to vector<1x1x1xf32>
    %c0_24 = arith.constant 0 : index
    %c0_25 = arith.constant 0 : index
    %c0_26 = arith.constant 0 : index
    %69 = vector.load %arg5[%c0_24, %c0_25, %c0_26] : memref<1x1x1xf32, #tpu.memory_space<vmem>>, vector<1x1x1xf32>
    tpu.vector_store %arg5[%c0_24, %c0_25, %c0_26], %68 {strides = array<i32>} : memref<1x1x1xf32, #tpu.memory_space<vmem>>, vector<1x1x1xf32>,
    %70 = arith.addf %21, %33 : vector<8x1xf32>
    %cst_27 = arith.constant 5.000000e+00 : f32
    %71 = vector.broadcast %cst_27 : f32 to vector<8x1xf32>
    %72 = arith.mulf %70, %71 : vector<8x1xf32>
    %cst_28 = arith.constant 5.000000e+00 : f32
    %73 = vector.broadcast %cst_28 : f32 to vector<8x8xf32>
    %74 = arith.mulf %31, %73 : vector<8x8xf32>
    %cst_29 = arith.constant dense<0xFF800000> : vector<8xf32>
    %75 = vector.multi_reduction <maximumf>, %74, %cst_29 [1] : vector<8x8xf32> to vector<8xf32>
    %76 = vector.shape_cast %75 : vector<8xf32> to vector<8x1xf32>
    %77 = arith.maximumf %76, %72 : vector<8x1xf32>
    %78 = arith.subf %72, %77 : vector<8x1xf32>
    %79 = math.exp %78 : vector<8x1xf32>
    %80 = vector.broadcast %77 : vector<8x1xf32> to vector<8x8xf32>
    %81 = arith.subf %74, %80 : vector<8x8xf32>
    %82 = math.exp %81 : vector<8x8xf32>
    %cst_30 = arith.constant dense<0.000000e+00> : vector<8xf32>
    %83 = vector.multi_reduction <add>, %82, %cst_30 [1] : vector<8x8xf32> to vector<8xf32>
    %84 = vector.shape_cast %83 : vector<8xf32> to vector<8x1xf32>
    %cst_31 = arith.constant 1.000000e+00 : f32
    %85 = vector.broadcast %cst_31 : f32 to vector<8x1xf32>
    %86 = arith.mulf %85, %84 : vector<8x1xf32>
    %87 = arith.addf %86, %79 : vector<8x1xf32>
    %cst_32 = arith.constant 0.000000e+00 : f32
    %88 = vector.broadcast %cst_32 : f32 to vector<8x1xf32>
    %89 = arith.subf %88, %77 : vector<8x1xf32>
    %90 = math.exp %89 : vector<8x1xf32>
    %cst_33 = arith.constant 1.000000e-07 : f32
    %91 = vector.broadcast %cst_33 : f32 to vector<8x1xf32>
    %92 = arith.mulf %91, %90 : vector<8x1xf32>
    %93 = arith.addf %87, %92 : vector<8x1xf32>
    %94 = math.log %93 : vector<8x1xf32>
    %95 = arith.addf %77, %94 : vector<8x1xf32>
    %96 = arith.subf %72, %95 : vector<8x1xf32>
    %97 = vector.shape_cast %96 : vector<8x1xf32> to vector<1x8x1xf32>
    %cst_34 = arith.constant dense<0.000000e+00> : vector<1xf32>
    %98 = vector.multi_reduction <add>, %97, %cst_34 [1, 2] : vector<1x8x1xf32> to vector<1xf32>
    %99 = vector.shape_cast %98 : vector<1xf32> to vector<1x1x1xf32>
    %100 = vector.extract %99[0, 0, 0] : f32 from vector<1x1x1xf32>
    %101 = vector.broadcast %100 : f32 to vector<1x1xf32>
    %cst_35 = arith.constant 0.000000e+00 : f32
    %102 = vector.broadcast %cst_35 : f32 to vector<1x1xf32>
    %103 = arith.subf %102, %101 : vector<1x1xf32>
    %104 = vector.shape_cast %103 : vector<1x1xf32> to vector<1x1x1xf32>
    %c0_36 = arith.constant 0 : index
    %c0_37 = arith.constant 0 : index
    %c0_38 = arith.constant 0 : index
    %105 = vector.load %arg6[%c0_36, %c0_37, %c0_38] : memref<1x1x1xf32, #tpu.memory_space<vmem>>, vector<1x1x1xf32>
    tpu.vector_store %arg6[%c0_36, %c0_37, %c0_38], %104 {strides = array<i32>} : memref<1x1x1xf32, #tpu.memory_space<vmem>>, vector<1x1x1xf32>,
    return
  }
  func.func @transform_0(%arg0: i32) -> (i32, i32) {
    %c0_i32 = arith.constant 0 : i32
    %c0_i32_0 = arith.constant 0 : i32
    return %arg0, %c0_i32 : i32, i32
  }
  func.func @transform_1(%arg0: i32) -> (i32, i32) {
    %c0_i32 = arith.constant 0 : i32
    %c0_i32_0 = arith.constant 0 : i32
    return %arg0, %c0_i32 : i32, i32
  }
  func.func @transform_2(%arg0: i32) -> (i32, i32, i32) {
    %c0_i32 = arith.constant 0 : i32
    %c0_i32_0 = arith.constant 0 : i32
    %c0_i32_1 = arith.constant 0 : i32
    return %arg0, %c0_i32, %c0_i32_0 : i32, i32, i32
  }
  func.func @transform_3(%arg0: i32) -> (i32, i32) {
    %c0_i32 = arith.constant 0 : i32
    %c0_i32_0 = arith.constant 0 : i32
    return %arg0, %c0_i32 : i32, i32
  }
  func.func @transform_4(%arg0: i32) -> (i32, i32, i32) {
    %c0_i32 = arith.constant 0 : i32
    %c0_i32_0 = arith.constant 0 : i32
    %c0_i32_1 = arith.constant 0 : i32
    return %arg0, %c0_i32, %c0_i32_0 : i32, i32, i32
  }
  func.func @transform_5(%arg0: i32) -> (i32, i32, i32) {
    %c0_i32 = arith.constant 0 : i32
    %c0_i32_0 = arith.constant 0 : i32
    %c0_i32_1 = arith.constant 0 : i32
    return %arg0, %c0_i32, %c0_i32_0 : i32, i32, i32
  }
}

</mosaic_0001>

<llo_original>
// kernel: tpu_custom_call.1
$region0: #{tpu_custom_call.1}
  #allocation0 [shape = 'u32[]', space=smem, size = 0x4, offset = 0x4, fixed_abs, tag = 'smem constant byte address 0x4 - core index']
  #allocation1 [shape = 'u32[144,128]{1,0:T(1,128)}', space=vmem, size = 0x12000, scoped, tag = 'internal scratch']
  %s0 = inlined_call_operand.vmem [shape: f32[8,32], index: 0, kind: input, shape index: {}]
  %s1 = inlined_call_operand.vmem [shape: f32[8,32], index: 1, kind: input, shape index: {}]
  %s2 = inlined_call_operand.vmem [shape: f32[8,32,8], index: 2, kind: input, shape index: {}]
  %s3 = inlined_call_operand.vmem [shape: f32[8,2], index: 3, kind: input, shape index: {}]
  %s4 = inlined_call_operand.hbm [shape: f32[1,1,1], index: 4, kind: output, shape index: {0}]
  %s5 = inlined_call_operand.hbm [shape: f32[1,1,1], index: 5, kind: output, shape index: {1}]
  %6 = xla_tuple %s4, %s5
  %s7 = sld [smem:[#allocation0]]
  $region34: #{tpu_custom_call.1} parent=0
    _
  %s9 = ssub.s32 1, %s7
  %s10 = scalar_select 0, %s9, %s7
  $region1: #{tpu_custom_call.1} parent=0
    #allocation2 [shape = 'u8[512]{0}', space=vmem, size = 0x400, scoped, tag = 'output window, operand 0, single buffered']
    #allocation3 [shape = 's32[1]{0}', space=sflag, size = 0x4, scoped, tag = 'scoped memory for tpu_custom_call.1']
    #allocation4 [shape = 'u8[512]{0}', space=vmem, size = 0x400, scoped, tag = 'output window, operand 1, single buffered']
    #allocation5 [shape = 's32[1]{0}', space=sflag, size = 0x4, scoped, tag = 'scoped memory for tpu_custom_call.1']
    %11 = vsyncpa [#allocation3], 0
    %12 = vsyncpa [#allocation5], 0
    // Predicated region
    $region2: #{tpu_custom_call.1} parent=1 // pred_check
      _
    $region3: #{tpu_custom_call.1} parent=1 // pred_check_branch
      %14 = sbr.rel (0) target = $region5
    $region4: #{tpu_custom_call.1} parent=1 // pred_region
      _
    $region5: #{tpu_custom_call.1} parent=1 // pred_fallthru
      _
    // Predicated region
    $region6: #{tpu_custom_call.1} parent=1 // pred_check
      _
    $region7: #{tpu_custom_call.1} parent=1 // pred_check_branch
      %16 = sbr.rel (0) target = $region9
    $region8: #{tpu_custom_call.1} parent=1 // pred_region
      _
    $region9: #{tpu_custom_call.1} parent=1 // pred_fallthru
      _
    // Predicated region
    $region10: #{tpu_custom_call.1} parent=1 // pred_check
      _
    $region11: #{tpu_custom_call.1} parent=1 // pred_check_branch
      %18 = sbr.rel (0) target = $region13
    $region12: #{tpu_custom_call.1} parent=1 // pred_region
      _
    $region13: #{tpu_custom_call.1} parent=1 // pred_fallthru
      _
    // Predicated region
    $region14: #{tpu_custom_call.1} parent=1 // pred_check
      _
    $region15: #{tpu_custom_call.1} parent=1 // pred_check_branch
      %20 = sbr.rel (0) target = $region17
    $region16: #{tpu_custom_call.1} parent=1 // pred_region
      _
    $region17: #{tpu_custom_call.1} parent=1 // pred_fallthru
      _
    %v21 = vld [vmem:[%s0] sm:$0xff]
    %v22 = vld [vmem:[%s1] sm:$0xff]
    %v23 = vld [vmem:[%s2] sm:$0xff]
    %v24 = vld [vmem:[%s2 + $0x8] sm:$0xff]
    %v25 = vld [vmem:[%s2 + $0x10] sm:$0xff]
    %v26 = vld [vmem:[%s2 + $0x18] sm:$0xff]
    %v27 = vld [vmem:[%s2 + $0x20] sm:$0xff]
    %v28 = vld [vmem:[%s2 + $0x28] sm:$0xff]
    %v29 = vld [vmem:[%s2 + $0x30] sm:$0xff]
    %v30 = vld [vmem:[%s2 + $0x38] sm:$0xff]
    %v31 = vld [vmem:[%s2 + $0x40] sm:$0xff]
    %v32 = vld [vmem:[%s2 + $0x48] sm:$0xff]
    %v33 = vld [vmem:[%s2 + $0x50] sm:$0xff]
    %v34 = vld [vmem:[%s2 + $0x58] sm:$0xff]
    %v35 = vld [vmem:[%s2 + $0x60] sm:$0xff]
    %v36 = vld [vmem:[%s2 + $0x68] sm:$0xff]
    %v37 = vld [vmem:[%s2 + $0x70] sm:$0xff]
    %v38 = vld [vmem:[%s2 + $0x78] sm:$0xff]
    %v39 = vld [vmem:[%s2 + $0x80] sm:$0xff]
    %v40 = vld [vmem:[%s2 + $0x88] sm:$0xff]
    %v41 = vld [vmem:[%s2 + $0x90] sm:$0xff]
    %v42 = vld [vmem:[%s2 + $0x98] sm:$0xff]
    %v43 = vld [vmem:[%s2 + $0xa0] sm:$0xff]
    %v44 = vld [vmem:[%s2 + $0xa8] sm:$0xff]
    %v45 = vld [vmem:[%s2 + $0xb0] sm:$0xff]
    %v46 = vld [vmem:[%s2 + $0xb8] sm:$0xff]
    %v47 = vld [vmem:[%s2 + $0xc0] sm:$0xff]
    %v48 = vld [vmem:[%s2 + $0xc8] sm:$0xff]
    %v49 = vld [vmem:[%s2 + $0xd0] sm:$0xff]
    %v50 = vld [vmem:[%s2 + $0xd8] sm:$0xff]
    %v51 = vld [vmem:[%s2 + $0xe0] sm:$0xff]
    %v52 = vld [vmem:[%s2 + $0xe8] sm:$0xff]
    %v53 = vld [vmem:[%s2 + $0xf0] sm:$0xff]
    %v54 = vld [vmem:[%s2 + $0xf8] sm:$0xff]
    %v55 = vld [vmem:[%s3] sm:$0xff]
    %v56 = vmul.f32 %v21, %v21
    %vm57 = vcmask 261120
    %v58 = vsel %vm57, %v56, 0.0
    %59 = vadd.xlane.f32.xlu0 %v58
    %v60 = vpop.xlane.xlu0 %59
    %v61 = vmax.f32 %v60, 1e-24
    %v62 = vrsqrt.pop %v61
    %v63 = vmul.f32 %v21, %v62
    %v64 = vmul.f32 %v63, %v22
    %v65 = vsel %vm57, %v64, 0.0
    %66 = vadd.xlane.f32.xlu0 %v65
    %v67 = vpop.xlane.xlu0 %66
    %v68 = vmul.f32 %v22, %v22
    %v69 = vsel %vm57, %v68, 0.0
    %70 = vadd.xlane.f32.xlu0 %v69
    %v71 = vpop.xlane.xlu0 %70
    %v72 = vmax.f32 %v71, 1e-24
    %v73 = vrsqrt.pop %v72
    %v74 = vmul.f32 %v67, %v73
    %v75 = vlaneseq
    %v76 = vshrl.u32 %v75, 7
    %v77 = vsub.s32 0, %v76
    %v78 = vrot.slane %v63, %v77
    %80 = vbcast.lane.b32.xlu0 %v78, 256
    %v81 = vpop.permute.xlu0 %80
    %s83 = sor.u32 256, 8
    %84 = vbcast.lane.b32.xlu0 %v78, %s83
    %v85 = vpop.permute.xlu0 %84
    %s87 = sor.u32 256, 16
    %88 = vbcast.lane.b32.xlu0 %v78, %s87
    %v89 = vpop.permute.xlu0 %88
    %s91 = sor.u32 256, 24
    %92 = vbcast.lane.b32.xlu0 %v78, %s91
    %v93 = vpop.permute.xlu0 %92
    %v94 = vlaneseq
    %v95 = vshrl.u32 %v94, 7
    %v96 = vsub.s32 1, %v95
    %v97 = vrot.slane %v63, %v96
    %99 = vbcast.lane.b32.xlu0 %v97, 256
    %v100 = vpop.permute.xlu0 %99
    %s102 = sor.u32 256, 8
    %103 = vbcast.lane.b32.xlu0 %v97, %s102
    %v104 = vpop.permute.xlu0 %103
    %s106 = sor.u32 256, 16
    %107 = vbcast.lane.b32.xlu0 %v97, %s106
    %v108 = vpop.permute.xlu0 %107
    %s110 = sor.u32 256, 24
    %111 = vbcast.lane.b32.xlu0 %v97, %s110
    %v112 = vpop.permute.xlu0 %111
    %v113 = vlaneseq
    %v114 = vshrl.u32 %v113, 7
    %v115 = vsub.s32 2, %v114
    %v116 = vrot.slane %v63, %v115
    %118 = vbcast.lane.b32.xlu0 %v116, 256
    %v119 = vpop.permute.xlu0 %118
    %s121 = sor.u32 256, 8
    %122 = vbcast.lane.b32.xlu0 %v116, %s121
    %v123 = vpop.permute.xlu0 %122
    %s125 = sor.u32 256, 16
    %126 = vbcast.lane.b32.xlu0 %v116, %s125
    %v127 = vpop.permute.xlu0 %126
    %s129 = sor.u32 256, 24
    %130 = vbcast.lane.b32.xlu0 %v116, %s129
    %v131 = vpop.permute.xlu0 %130
    %v132 = vlaneseq
    %v133 = vshrl.u32 %v132, 7
    %v134 = vsub.s32 3, %v133
    %v135 = vrot.slane %v63, %v134
    %137 = vbcast.lane.b32.xlu0 %v135, 256
    %v138 = vpop.permute.xlu0 %137
    %s140 = sor.u32 256, 8
    %141 = vbcast.lane.b32.xlu0 %v135, %s140
    %v142 = vpop.permute.xlu0 %141
    %s144 = sor.u32 256, 16
    %145 = vbcast.lane.b32.xlu0 %v135, %s144
    %v146 = vpop.permute.xlu0 %145
    %s148 = sor.u32 256, 24
    %149 = vbcast.lane.b32.xlu0 %v135, %s148
    %v150 = vpop.permute.xlu0 %149
    %v151 = vlaneseq
    %v152 = vshrl.u32 %v151, 7
    %v153 = vsub.s32 4, %v152
    %v154 = vrot.slane %v63, %v153
    %156 = vbcast.lane.b32.xlu0 %v154, 256
    %v157 = vpop.permute.xlu0 %156
    %s159 = sor.u32 256, 8
    %160 = vbcast.lane.b32.xlu0 %v154, %s159
    %v161 = vpop.permute.xlu0 %160
    %s163 = sor.u32 256, 16
    %164 = vbcast.lane.b32.xlu0 %v154, %s163
    %v165 = vpop.permute.xlu0 %164
    %s167 = sor.u32 256, 24
    %168 = vbcast.lane.b32.xlu0 %v154, %s167
    %v169 = vpop.permute.xlu0 %168
    %v170 = vlaneseq
    %v171 = vshrl.u32 %v170, 7
    %v172 = vsub.s32 5, %v171
    %v173 = vrot.slane %v63, %v172
    %175 = vbcast.lane.b32.xlu0 %v173, 256
    %v176 = vpop.permute.xlu0 %175
    %s178 = sor.u32 256, 8
    %179 = vbcast.lane.b32.xlu0 %v173, %s178
    %v180 = vpop.permute.xlu0 %179
    %s182 = sor.u32 256, 16
    %183 = vbcast.lane.b32.xlu0 %v173, %s182
    %v184 = vpop.permute.xlu0 %183
    %s186 = sor.u32 256, 24
    %187 = vbcast.lane.b32.xlu0 %v173, %s186
    %v188 = vpop.permute.xlu0 %187
    %v189 = vlaneseq
    %v190 = vshrl.u32 %v189, 7
    %v191 = vsub.s32 6, %v190
    %v192 = vrot.slane %v63, %v191
    %194 = vbcast.lane.b32.xlu0 %v192, 256
    %v195 = vpop.permute.xlu0 %194
    %s197 = sor.u32 256, 8
    %198 = vbcast.lane.b32.xlu0 %v192, %s197
    %v199 = vpop.permute.xlu0 %198
    %s201 = sor.u32 256, 16
    %202 = vbcast.lane.b32.xlu0 %v192, %s201
    %v203 = vpop.permute.xlu0 %202
    %s205 = sor.u32 256, 24
    %206 = vbcast.lane.b32.xlu0 %v192, %s205
    %v207 = vpop.permute.xlu0 %206
    %v208 = vlaneseq
    %v209 = vshrl.u32 %v208, 7
    %v210 = vsub.s32 7, %v209
    %v211 = vrot.slane %v63, %v210
    %213 = vbcast.lane.b32.xlu0 %v211, 256
    %v214 = vpop.permute.xlu0 %213
    %s216 = sor.u32 256, 8
    %217 = vbcast.lane.b32.xlu0 %v211, %s216
    %v218 = vpop.permute.xlu0 %217
    %s220 = sor.u32 256, 16
    %221 = vbcast.lane.b32.xlu0 %v211, %s220
    %v222 = vpop.permute.xlu0 %221
    %s224 = sor.u32 256, 24
    %225 = vbcast.lane.b32.xlu0 %v211, %s224
    %v226 = vpop.permute.xlu0 %225
    %v227 = vmul.f32 %v81, %v23
    %v228 = vmul.f32 %v85, %v24
    %v229 = vmul.f32 %v89, %v25
    %v230 = vmul.f32 %v93, %v26
    %v231 = vmul.f32 %v100, %v27
    %v232 = vmul.f32 %v104, %v28
    %v233 = vmul.f32 %v108, %v29
    %v234 = vmul.f32 %v112, %v30
    %v235 = vmul.f32 %v119, %v31
    %v236 = vmul.f32 %v123, %v32
    %v237 = vmul.f32 %v127, %v33
    %v238 = vmul.f32 %v131, %v34
    %v239 = vmul.f32 %v138, %v35
    %v240 = vmul.f32 %v142, %v36
    %v241 = vmul.f32 %v146, %v37
    %v242 = vmul.f32 %v150, %v38
    %v243 = vmul.f32 %v157, %v39
    %v244 = vmul.f32 %v161, %v40
    %v245 = vmul.f32 %v165, %v41
    %v246 = vmul.f32 %v169, %v42
    %v247 = vmul.f32 %v176, %v43
    %v248 = vmul.f32 %v180, %v44
    %v249 = vmul.f32 %v184, %v45
    %v250 = vmul.f32 %v188, %v46
    %v251 = vmul.f32 %v195, %v47
    %v252 = vmul.f32 %v199, %v48
    %v253 = vmul.f32 %v203, %v49
    %v254 = vmul.f32 %v207, %v50
    %v255 = vmul.f32 %v214, %v51
    %v256 = vmul.f32 %v218, %v52
    %v257 = vmul.f32 %v222, %v53
    %v258 = vmul.f32 %v226, %v54
    %vm259 = vcmask 64512
    %v260 = vsel %vm259, %v227, 0.0
    %v261 = vsel %vm259, %v228, 0.0
    %v262 = vadd.f32 %v260, %v261
    %v263 = vsel %vm259, %v229, 0.0
    %v264 = vadd.f32 %v262, %v263
    %v265 = vsel %vm259, %v230, 0.0
    %v266 = vadd.f32 %v264, %v265
    %v267 = vrot.slane %v266, 4
    %v268 = vadd.f32 %v266, %v267
    %v269 = vrot.slane %v268, 2
    %v270 = vadd.f32 %v268, %v269
    %v271 = vrot.slane %v270, 1
    %v272 = vadd.f32 %v270, %v271
    %v273 = vsel %vm259, %v231, 0.0
    %v274 = vsel %vm259, %v232, 0.0
    %v275 = vadd.f32 %v273, %v274
    %v276 = vsel %vm259, %v233, 0.0
    %v277 = vadd.f32 %v275, %v276
    %v278 = vsel %vm259, %v234, 0.0
    %v279 = vadd.f32 %v277, %v278
    %v280 = vrot.slane %v279, 4
    %v281 = vadd.f32 %v279, %v280
    %v282 = vrot.slane %v281, 2
    %v283 = vadd.f32 %v281, %v282
    %v284 = vrot.slane %v283, 1
    %v285 = vadd.f32 %v283, %v284
    %v286 = vsel %vm259, %v235, 0.0
    %v287 = vsel %vm259, %v236, 0.0
    %v288 = vadd.f32 %v286, %v287
    %v289 = vsel %vm259, %v237, 0.0
    %v290 = vadd.f32 %v288, %v289
    %v291 = vsel %vm259, %v238, 0.0
    %v292 = vadd.f32 %v290, %v291
    %v293 = vrot.slane %v292, 4
    %v294 = vadd.f32 %v292, %v293
    %v295 = vrot.slane %v294, 2
    %v296 = vadd.f32 %v294, %v295
    %v297 = vrot.slane %v296, 1
    %v298 = vadd.f32 %v296, %v297
    %v299 = vsel %vm259, %v239, 0.0
    %v300 = vsel %vm259, %v240, 0.0
    %v301 = vadd.f32 %v299, %v300
    %v302 = vsel %vm259, %v241, 0.0
    %v303 = vadd.f32 %v301, %v302
    %v304 = vsel %vm259, %v242, 0.0
    %v305 = vadd.f32 %v303, %v304
    %v306 = vrot.slane %v305, 4
    %v307 = vadd.f32 %v305, %v306
    %v308 = vrot.slane %v307, 2
    %v309 = vadd.f32 %v307, %v308
    %v310 = vrot.slane %v309, 1
    %v311 = vadd.f32 %v309, %v310
    %v312 = vsel %vm259, %v243, 0.0
    %v313 = vsel %vm259, %v244, 0.0
    %v314 = vadd.f32 %v312, %v313
    %v315 = vsel %vm259, %v245, 0.0
    %v316 = vadd.f32 %v314, %v315
    %v317 = vsel %vm259, %v246, 0.0
    %v318 = vadd.f32 %v316, %v317
    %v319 = vrot.slane %v318, 4
    %v320 = vadd.f32 %v318, %v319
    %v321 = vrot.slane %v320, 2
    %v322 = vadd.f32 %v320, %v321
    %v323 = vrot.slane %v322, 1
    %v324 = vadd.f32 %v322, %v323
    %v325 = vsel %vm259, %v247, 0.0
    %v326 = vsel %vm259, %v248, 0.0
    %v327 = vadd.f32 %v325, %v326
    %v328 = vsel %vm259, %v249, 0.0
    %v329 = vadd.f32 %v327, %v328
    %v330 = vsel %vm259, %v250, 0.0
    %v331 = vadd.f32 %v329, %v330
    %v332 = vrot.slane %v331, 4
    %v333 = vadd.f32 %v331, %v332
    %v334 = vrot.slane %v333, 2
    %v335 = vadd.f32 %v333, %v334
    %v336 = vrot.slane %v335, 1
    %v337 = vadd.f32 %v335, %v336
    %v338 = vsel %vm259, %v251, 0.0
    %v339 = vsel %vm259, %v252, 0.0
    %v340 = vadd.f32 %v338, %v339
    %v341 = vsel %vm259, %v253, 0.0
    %v342 = vadd.f32 %v340, %v341
    %v343 = vsel %vm259, %v254, 0.0
    %v344 = vadd.f32 %v342, %v343
    %v345 = vrot.slane %v344, 4
    %v346 = vadd.f32 %v344, %v345
    %v347 = vrot.slane %v346, 2
    %v348 = vadd.f32 %v346, %v347
    %v349 = vrot.slane %v348, 1
    %v350 = vadd.f32 %v348, %v349
    %v351 = vsel %vm259, %v255, 0.0
    %v352 = vsel %vm259, %v256, 0.0
    %v353 = vadd.f32 %v351, %v352
    %v354 = vsel %vm259, %v257, 0.0
    %v355 = vadd.f32 %v353, %v354
    %v356 = vsel %vm259, %v258, 0.0
    %v357 = vadd.f32 %v355, %v356
    %v358 = vrot.slane %v357, 4
    %v359 = vadd.f32 %v357, %v358
    %v360 = vrot.slane %v359, 2
    %v361 = vadd.f32 %v359, %v360
    %v362 = vrot.slane %v361, 1
    %v363 = vadd.f32 %v361, %v362
    %v364 = vmul.f32 %v23, %v23
    %v365 = vmul.f32 %v24, %v24
    %v366 = vmul.f32 %v25, %v25
    %v367 = vmul.f32 %v26, %v26
    %v368 = vmul.f32 %v27, %v27
    %v369 = vmul.f32 %v28, %v28
    %v370 = vmul.f32 %v29, %v29
    %v371 = vmul.f32 %v30, %v30
    %v372 = vmul.f32 %v31, %v31
    %v373 = vmul.f32 %v32, %v32
    %v374 = vmul.f32 %v33, %v33
    %v375 = vmul.f32 %v34, %v34
    %v376 = vmul.f32 %v35, %v35
    %v377 = vmul.f32 %v36, %v36
    %v378 = vmul.f32 %v37, %v37
    %v379 = vmul.f32 %v38, %v38
    %v380 = vmul.f32 %v39, %v39
    %v381 = vmul.f32 %v40, %v40
    %v382 = vmul.f32 %v41, %v41
    %v383 = vmul.f32 %v42, %v42
    %v384 = vmul.f32 %v43, %v43
    %v385 = vmul.f32 %v44, %v44
    %v386 = vmul.f32 %v45, %v45
    %v387 = vmul.f32 %v46, %v46
    %v388 = vmul.f32 %v47, %v47
    %v389 = vmul.f32 %v48, %v48
    %v390 = vmul.f32 %v49, %v49
    %v391 = vmul.f32 %v50, %v50
    %v392 = vmul.f32 %v51, %v51
    %v393 = vmul.f32 %v52, %v52
    %v394 = vmul.f32 %v53, %v53
    %v395 = vmul.f32 %v54, %v54
    %v396 = vsel %vm259, %v364, 0.0
    %v397 = vsel %vm259, %v365, 0.0
    %v398 = vadd.f32 %v396, %v397
    %v399 = vsel %vm259, %v366, 0.0
    %v400 = vadd.f32 %v398, %v399
    %v401 = vsel %vm259, %v367, 0.0
    %v402 = vadd.f32 %v400, %v401
    %v403 = vrot.slane %v402, 4
    %v404 = vadd.f32 %v402, %v403
    %v405 = vrot.slane %v404, 2
    %v406 = vadd.f32 %v404, %v405
    %v407 = vrot.slane %v406, 1
    %v408 = vadd.f32 %v406, %v407
    %v409 = vsel %vm259, %v368, 0.0
    %v410 = vsel %vm259, %v369, 0.0
    %v411 = vadd.f32 %v409, %v410
    %v412 = vsel %vm259, %v370, 0.0
    %v413 = vadd.f32 %v411, %v412
    %v414 = vsel %vm259, %v371, 0.0
    %v415 = vadd.f32 %v413, %v414
    %v416 = vrot.slane %v415, 4
    %v417 = vadd.f32 %v415, %v416
    %v418 = vrot.slane %v417, 2
    %v419 = vadd.f32 %v417, %v418
    %v420 = vrot.slane %v419, 1
    %v421 = vadd.f32 %v419, %v420
    %v422 = vsel %vm259, %v372, 0.0
    %v423 = vsel %vm259, %v373, 0.0
    %v424 = vadd.f32 %v422, %v423
    %v425 = vsel %vm259, %v374, 0.0
    %v426 = vadd.f32 %v424, %v425
    %v427 = vsel %vm259, %v375, 0.0
    %v428 = vadd.f32 %v426, %v427
    %v429 = vrot.slane %v428, 4
    %v430 = vadd.f32 %v428, %v429
    %v431 = vrot.slane %v430, 2
    %v432 = vadd.f32 %v430, %v431
    %v433 = vrot.slane %v432, 1
    %v434 = vadd.f32 %v432, %v433
    %v435 = vsel %vm259, %v376, 0.0
    %v436 = vsel %vm259, %v377, 0.0
    %v437 = vadd.f32 %v435, %v436
    %v438 = vsel %vm259, %v378, 0.0
    %v439 = vadd.f32 %v437, %v438
    %v440 = vsel %vm259, %v379, 0.0
    %v441 = vadd.f32 %v439, %v440
    %v442 = vrot.slane %v441, 4
    %v443 = vadd.f32 %v441, %v442
    %v444 = vrot.slane %v443, 2
    %v445 = vadd.f32 %v443, %v444
    %v446 = vrot.slane %v445, 1
    %v447 = vadd.f32 %v445, %v446
    %v448 = vsel %vm259, %v380, 0.0
    %v449 = vsel %vm259, %v381, 0.0
    %v450 = vadd.f32 %v448, %v449
    %v451 = vsel %vm259, %v382, 0.0
    %v452 = vadd.f32 %v450, %v451
    %v453 = vsel %vm259, %v383, 0.0
    %v454 = vadd.f32 %v452, %v453
    %v455 = vrot.slane %v454, 4
    %v456 = vadd.f32 %v454, %v455
    %v457 = vrot.slane %v456, 2
    %v458 = vadd.f32 %v456, %v457
    %v459 = vrot.slane %v458, 1
    %v460 = vadd.f32 %v458, %v459
    %v461 = vsel %vm259, %v384, 0.0
    %v462 = vsel %vm259, %v385, 0.0
    %v463 = vadd.f32 %v461, %v462
    %v464 = vsel %vm259, %v386, 0.0
    %v465 = vadd.f32 %v463, %v464
    %v466 = vsel %vm259, %v387, 0.0
    %v467 = vadd.f32 %v465, %v466
    %v468 = vrot.slane %v467, 4
    %v469 = vadd.f32 %v467, %v468
    %v470 = vrot.slane %v469, 2
    %v471 = vadd.f32 %v469, %v470
    %v472 = vrot.slane %v471, 1
    %v473 = vadd.f32 %v471, %v472
    %v474 = vsel %vm259, %v388, 0.0
    %v475 = vsel %vm259, %v389, 0.0
    %v476 = vadd.f32 %v474, %v475
    %v477 = vsel %vm259, %v390, 0.0
    %v478 = vadd.f32 %v476, %v477
    %v479 = vsel %vm259, %v391, 0.0
    %v480 = vadd.f32 %v478, %v479
    %v481 = vrot.slane %v480, 4
    %v482 = vadd.f32 %v480, %v481
    %v483 = vrot.slane %v482, 2
    %v484 = vadd.f32 %v482, %v483
    %v485 = vrot.slane %v484, 1
    %v486 = vadd.f32 %v484, %v485
    %v487 = vsel %vm259, %v392, 0.0
    %v488 = vsel %vm259, %v393, 0.0
    %v489 = vadd.f32 %v487, %v488
    %v490 = vsel %vm259, %v394, 0.0
    %v491 = vadd.f32 %v489, %v490
    %v492 = vsel %vm259, %v395, 0.0
    %v493 = vadd.f32 %v491, %v492
    %v494 = vrot.slane %v493, 4
    %v495 = vadd.f32 %v493, %v494
    %v496 = vrot.slane %v495, 2
    %v497 = vadd.f32 %v495, %v496
    %v498 = vrot.slane %v497, 1
    %v499 = vadd.f32 %v497, %v498
    %v500 = vmax.f32 %v408, 1e-24
    %v501 = vmax.f32 %v421, 1e-24
    %v502 = vmax.f32 %v434, 1e-24
    %v503 = vmax.f32 %v447, 1e-24
    %v504 = vmax.f32 %v460, 1e-24
    %v505 = vmax.f32 %v473, 1e-24
    %v506 = vmax.f32 %v486, 1e-24
    %v507 = vmax.f32 %v499, 1e-24
    %v508 = vrsqrt.pop %v500
    %v509 = vrsqrt.pop %v501
    %v510 = vrsqrt.pop %v502
    %v511 = vrsqrt.pop %v503
    %v512 = vrsqrt.pop %v504
    %v513 = vrsqrt.pop %v505
    %v514 = vrsqrt.pop %v506
    %v515 = vrsqrt.pop %v507
    %v516 = vmul.f32 %v272, %v508
    %v517 = vmul.f32 %v285, %v509
    %v518 = vmul.f32 %v298, %v510
    %v519 = vmul.f32 %v311, %v511
    %v520 = vmul.f32 %v324, %v512
    %v521 = vmul.f32 %v337, %v513
    %v522 = vmul.f32 %v350, %v514
    %v523 = vmul.f32 %v363, %v515
    %v524 = vadd.f32 %v67, %v55
    %v525 = vmul.f32 %v524, 2.0
    %v526 = vmul.f32 %v272, 2.0
    %v527 = vmul.f32 %v285, 2.0
    %v528 = vmul.f32 %v298, 2.0
    %v529 = vmul.f32 %v311, 2.0
    %v530 = vmul.f32 %v324, 2.0
    %v531 = vmul.f32 %v337, 2.0
    %v532 = vmul.f32 %v350, 2.0
    %v533 = vmul.f32 %v363, 2.0
    %vm542 = vcmask 1041409
    %v543 = vsel %vm542, %v527, %v526
    %vm544 = vcmask 1042434
    %v545 = vsel %vm544, %v528, %v543
    %vm546 = vcmask 1043459
    %v547 = vsel %vm546, %v529, %v545
    %vm548 = vcmask 1044484
    %v549 = vsel %vm548, %v530, %v547
    %vm550 = vcmask 1045509
    %v551 = vsel %vm550, %v531, %v549
    %vm552 = vcmask 1046534
    %v553 = vsel %vm552, %v532, %v551
    %vm554 = vcmask 1047559
    %v555 = vsel %vm554, %v533, %v553
    %v557 = vsel %vm259, %v555, -inf
    %558 = vmax.xlane.f32.xlu0 %v557
    %v559 = vpop.xlane.xlu0 %558
    %v560 = vmax.f32 %v559, %v525
    %v561 = vsub.f32 %v525, %v560
    %v562 = vmul.f32 %v561, 1.442695
    %v563 = vpow.pop %v562
    %565 = vset.pattern.permute.xlu0 0
    %566 = vperm.xlu0 %565, %v560
    %v567 = vpop.permute.xlu0 %566
    %v568 = vrot.slane %v567, 1
    %v569 = vrot.slane %v567, 2
    %v570 = vrot.slane %v567, 3
    %v571 = vrot.slane %v567, 4
    %v572 = vrot.slane %v567, 5
    %v573 = vrot.slane %v567, 6
    %v574 = vrot.slane %v567, 7
    %v583 = vsub.f32 %v526, %v567
    %v584 = vsub.f32 %v527, %v568
    %v585 = vsub.f32 %v528, %v569
    %v586 = vsub.f32 %v529, %v570
    %v587 = vsub.f32 %v530, %v571
    %v588 = vsub.f32 %v531, %v572
    %v589 = vsub.f32 %v532, %v573
    %v590 = vsub.f32 %v533, %v574
    %v591 = vmul.f32 %v583, 1.442695
    %v592 = vpow.pop %v591
    %v593 = vmul.f32 %v584, 1.442695
    %v594 = vpow.pop %v593
    %v595 = vmul.f32 %v585, 1.442695
    %v596 = vpow.pop %v595
    %v597 = vmul.f32 %v586, 1.442695
    %v598 = vpow.pop %v597
    %v599 = vmul.f32 %v587, 1.442695
    %v600 = vpow.pop %v599
    %v601 = vmul.f32 %v588, 1.442695
    %v602 = vpow.pop %v601
    %v603 = vmul.f32 %v589, 1.442695
    %v604 = vpow.pop %v603
    %v605 = vmul.f32 %v590, 1.442695
    %v606 = vpow.pop %v605
    %v615 = vrot.slane %v594, 7
    %v616 = vsel %vm542, %v615, %v592
    %v617 = vrot.slane %v596, 6
    %v618 = vsel %vm544, %v617, %v616
    %v619 = vrot.slane %v598, 5
    %v620 = vsel %vm546, %v619, %v618
    %v621 = vrot.slane %v600, 4
    %v622 = vsel %vm548, %v621, %v620
    %v623 = vrot.slane %v602, 3
    %v624 = vsel %vm550, %v623, %v622
    %v625 = vrot.slane %v604, 2
    %v626 = vsel %vm552, %v625, %v624
    %v627 = vrot.slane %v606, 1
    %v628 = vsel %vm554, %v627, %v626
    %v630 = vsel %vm259, %v628, 0.0
    %631 = vadd.xlane.f32.xlu0 %v630
    %v632 = vpop.xlane.xlu0 %631
    %v633 = vadd.f32 %v632, %v563
    %v634 = vsub.f32 0.0, %v560
    %v635 = vmul.f32 %v634, 1.442695
    %v636 = vpow.pop %v635
    %v637 = vmul.f32 %v636, 1e-07
    %v638 = vadd.f32 %v633, %v637
    %v639 = vlog2.pop %v638
    %v640 = vmul.f32 %v639, 0.6931472
    %v641 = vadd.f32 %v560, %v640
    %v642 = vsub.f32 %v525, %v641
    %vm643 = vcmask 7168
    %v644 = vsel %vm643, %v642, 0.0
    %645 = vadd.xlane.f32.xlu0 %v644
    %v646 = vpop.xlane.xlu0 %645
    %v647 = vrot.slane %v646, 4
    %v648 = vadd.f32 %v646, %v647
    %v649 = vrot.slane %v648, 2
    %v650 = vadd.f32 %v648, %v649
    %v651 = vrot.slane %v650, 1
    %v652 = vadd.f32 %v650, %v651
    %s653 = vtos %v652
    %v654 = vstv %s653
    %v655 = vsub.f32 0.0, %v654
    %vm656 = vcmask 0
    %657 = vst.msk [vmem:[#allocation2] sm:$0x1] %vm656, %v655
    %v658 = vadd.f32 %v74, %v55
    %v659 = vmul.f32 %v658, 5.0
    %v660 = vmul.f32 %v516, 5.0
    %v661 = vmul.f32 %v517, 5.0
    %v662 = vmul.f32 %v518, 5.0
    %v663 = vmul.f32 %v519, 5.0
    %v664 = vmul.f32 %v520, 5.0
    %v665 = vmul.f32 %v521, 5.0
    %v666 = vmul.f32 %v522, 5.0
    %v667 = vmul.f32 %v523, 5.0
    %v676 = vsel %vm542, %v661, %v660
    %v677 = vsel %vm544, %v662, %v676
    %v678 = vsel %vm546, %v663, %v677
    %v679 = vsel %vm548, %v664, %v678
    %v680 = vsel %vm550, %v665, %v679
    %v681 = vsel %vm552, %v666, %v680
    %v682 = vsel %vm554, %v667, %v681
    %v684 = vsel %vm259, %v682, -inf
    %685 = vmax.xlane.f32.xlu0 %v684
    %v686 = vpop.xlane.xlu0 %685
    %v687 = vmax.f32 %v686, %v659
    %v688 = vsub.f32 %v659, %v687
    %v689 = vmul.f32 %v688, 1.442695
    %v690 = vpow.pop %v689
    %692 = vset.pattern.permute.xlu0 1
    %693 = vperm.xlu0 %692, %v687
    %v694 = vpop.permute.xlu0 %693
    %v695 = vrot.slane %v694, 1
    %v696 = vrot.slane %v694, 2
    %v697 = vrot.slane %v694, 3
    %v698 = vrot.slane %v694, 4
    %v699 = vrot.slane %v694, 5
    %v700 = vrot.slane %v694, 6
    %v701 = vrot.slane %v694, 7
    %v710 = vsub.f32 %v660, %v694
    %v711 = vsub.f32 %v661, %v695
    %v712 = vsub.f32 %v662, %v696
    %v713 = vsub.f32 %v663, %v697
    %v714 = vsub.f32 %v664, %v698
    %v715 = vsub.f32 %v665, %v699
    %v716 = vsub.f32 %v666, %v700
    %v717 = vsub.f32 %v667, %v701
    %v718 = vmul.f32 %v710, 1.442695
    %v719 = vpow.pop %v718
    %v720 = vmul.f32 %v711, 1.442695
    %v721 = vpow.pop %v720
    %v722 = vmul.f32 %v712, 1.442695
    %v723 = vpow.pop %v722
    %v724 = vmul.f32 %v713, 1.442695
    %v725 = vpow.pop %v724
    %v726 = vmul.f32 %v714, 1.442695
    %v727 = vpow.pop %v726
    %v728 = vmul.f32 %v715, 1.442695
    %v729 = vpow.pop %v728
    %v730 = vmul.f32 %v716, 1.442695
    %v731 = vpow.pop %v730
    %v732 = vmul.f32 %v717, 1.442695
    %v733 = vpow.pop %v732
    %v742 = vrot.slane %v721, 7
    %v743 = vsel %vm542, %v742, %v719
    %v744 = vrot.slane %v723, 6
    %v745 = vsel %vm544, %v744, %v743
    %v746 = vrot.slane %v725, 5
    %v747 = vsel %vm546, %v746, %v745
    %v748 = vrot.slane %v727, 4
    %v749 = vsel %vm548, %v748, %v747
    %v750 = vrot.slane %v729, 3
    %v751 = vsel %vm550, %v750, %v749
    %v752 = vrot.slane %v731, 2
    %v753 = vsel %vm552, %v752, %v751
    %v754 = vrot.slane %v733, 1
    %v755 = vsel %vm554, %v754, %v753
    %v757 = vsel %vm259, %v755, 0.0
    %758 = vadd.xlane.f32.xlu0 %v757
    %v759 = vpop.xlane.xlu0 %758
    %v760 = vadd.f32 %v759, %v690
    %v761 = vsub.f32 0.0, %v687
    %v762 = vmul.f32 %v761, 1.442695
    %v763 = vpow.pop %v762
    %v764 = vmul.f32 %v763, 1e-07
    %v765 = vadd.f32 %v760, %v764
    %v766 = vlog2.pop %v765
    %v767 = vmul.f32 %v766, 0.6931472
    %v768 = vadd.f32 %v687, %v767
    %v769 = vsub.f32 %v659, %v768
    %771 = vrot.lane.b32.xlu0 %v769, 127
    %v772 = vpop.permute.xlu0 %771
    %v774 = vsel %vm643, %v772, 0.0
    %775 = vadd.xlane.f32.xlu0 %v774
    %v776 = vpop.xlane.xlu0 %775
    %v777 = vrot.slane %v776, 4
    %v778 = vadd.f32 %v776, %v777
    %v779 = vrot.slane %v778, 2
    %v780 = vadd.f32 %v778, %v779
    %v781 = vrot.slane %v780, 1
    %v782 = vadd.f32 %v780, %v781
    %s783 = vtos %v782
    %v784 = vstv %s783
    %v785 = vsub.f32 0.0, %v784
    %786 = vst.msk [vmem:[#allocation4] sm:$0x1] %vm656, %v785
    // Predicated region
    $region18: #{tpu_custom_call.1} parent=1 // pred_check
      _
    $region19: #{tpu_custom_call.1} parent=1 // pred_check_branch
      %788 = sbr.rel (0) target = $region21
    $region20: #{tpu_custom_call.1} parent=1 // pred_region
      %s790 = ssub.s32 16, 16
      %791 = vsyncadd [#allocation3], %s790
      %s793 = sshll.u32 [#allocation2], 4
      %s794 = int_to_ptr.vmem [resolvable:$true] %s793
      %796 = dma.vmem_to_hbm [thread:$0]  %s794, 16, %s4, [#allocation3]
    $region21: #{tpu_custom_call.1} parent=1 // pred_fallthru
      _
    // Predicated region
    $region22: #{tpu_custom_call.1} parent=1 // pred_check
      _
    $region23: #{tpu_custom_call.1} parent=1 // pred_check_branch
      %798 = sbr.rel (0) target = $region25
    $region24: #{tpu_custom_call.1} parent=1 // pred_region
      %s800 = ssub.s32 16, 16
      %801 = vsyncadd [#allocation5], %s800
      %s803 = sshll.u32 [#allocation4], 4
      %s804 = int_to_ptr.vmem [resolvable:$true] %s803
      %806 = dma.vmem_to_hbm [thread:$0]  %s804, 16, %s5, [#allocation5]
    $region25: #{tpu_custom_call.1} parent=1 // pred_fallthru
      _
    // Predicated region
    $region26: #{tpu_custom_call.1} parent=1 // pred_check
      _
    $region27: #{tpu_custom_call.1} parent=1 // pred_check_branch
      %808 = sbr.rel (0) target = $region29
    $region28: #{tpu_custom_call.1} parent=1 // pred_region
      %809 = dma.done [#allocation3], 16
    $region29: #{tpu_custom_call.1} parent=1 // pred_fallthru
      _
    // Predicated region
    $region30: #{tpu_custom_call.1} parent=1 // pred_check
      _
    $region31: #{tpu_custom_call.1} parent=1 // pred_check_branch
      %811 = sbr.rel (0) target = $region33
    $region32: #{tpu_custom_call.1} parent=1 // pred_region
      %812 = dma.done [#allocation5], 16
    $region33: #{tpu_custom_call.1} parent=1 // pred_fallthru
      _
    %813 = vsyncpa [#allocation3], 1
    %814 = vsyncpa [#allocation5], 1

</llo_original>
